<compile_context>
chip_gen: v6e
topology: v6e:2x2x1
jax: 0.10.0
libtpu: 0.0.40
codegen_flags: <defaults>
</compile_context>

<pallas_src>
import functools

import jax
import jax.numpy as jnp
from jax.experimental import pallas as pl
from jax.experimental.pallas import tpu as pltpu

_LANE = 128
_SUBLANE = 8


def _distill_tile_kernel(s_loc_ref, t_loc_ref, s_conf_ref, t_conf_ref, cls_ref,
                         out_ref, *, n_rows, tile_n, inv_temp, need_mask):
    pid = pl.program_id(0)

    if need_mask:
        row_ids = pid * tile_n + jax.lax.broadcasted_iota(
            jnp.int32, (tile_n, 1), 0)
        valid = row_ids < n_rows                           # [tile_n, 1]
        validf = valid.astype(jnp.float32)

    # ---------- smooth-L1 partial sum over the loc block ---------------------
    diff = s_loc_ref[...].astype(jnp.float32) - t_loc_ref[...].astype(jnp.float32)
    absd = jnp.abs(diff)
    sl1 = jnp.where(absd < 1.0, 0.5 * diff * diff, absd - 0.5)
    if need_mask:
        sl1 = jnp.where(valid, sl1, 0.0)                   # kill ragged-tail rows
    loc_sum = jnp.sum(sl1)

    # ---------- logits (masked to a finite fill only when ragged) ------------
    s_conf = s_conf_ref[...].astype(jnp.float32)           # [tile_n, C]
    t_conf = t_conf_ref[...].astype(jnp.float32)
    if need_mask:
        s_conf = jnp.where(valid, s_conf, 0.0)
        t_conf = jnp.where(valid, t_conf, 0.0)

    # ---------- shared student shift (reused by CE and tempered-KL paths) ----
    s_max = jnp.max(s_conf, axis=-1, keepdims=True)        # [tile_n, 1]
    x = s_conf - s_max                                      # shifted raw logits

    # hard cross-entropy:  ce = logsumexp(s_conf) - s_conf[cls]
    #                          = log(sum exp(x)) - x[cls]
    s_sumexp = jnp.sum(jnp.exp(x), axis=-1, keepdims=True)
    col_ids = jax.lax.broadcasted_iota(jnp.int32, x.shape, 1)
    cls = cls_ref[...]                                      # [tile_n, 1] int32
    x_cls = jnp.sum(jnp.where(col_ids == cls, x, 0.0), axis=-1, keepdims=True)
    ce_row = jnp.log(s_sumexp) - x_cls                      # [tile_n, 1]

    # ---------- temperature-scaled KL(teacher || student) --------------------
    # student tempered stats reuse x:  s_t - max(s_t) == inv_temp * x
    xt = x * inv_temp
    s_sumexp_t = jnp.sum(jnp.exp(xt), axis=-1, keepdims=True)
    log_s_sumexp_t = jnp.log(s_sumexp_t)                    # [tile_n, 1]

    t_t = t_conf * inv_temp
    t_max = jnp.max(t_t, axis=-1, keepdims=True)
    yt = t_t - t_max
    t_exp = jnp.exp(yt)
    t_sumexp = jnp.sum(t_exp, axis=-1, keepdims=True)

    #   kl_row = sum_j p_t(j) * (log p_t(j) - log_softmax(s/T)(j))
    #          = [sum_j t_exp_j * ((yt_j - xt_j) + log s_sumexp_t)] / t_sumexp
    #            - log(t_sumexp)
    d = (yt - xt) + log_s_sumexp_t
    kl_row = (jnp.sum(t_exp * d, axis=-1, keepdims=True) / t_sumexp
              - jnp.log(t_sumexp))                          # [tile_n, 1]

    if need_mask:
        ce_sum = jnp.sum(ce_row * validf)
        kl_sum = jnp.sum(kl_row * validf)
    else:
        ce_sum = jnp.sum(ce_row)
        kl_sum = jnp.sum(kl_row)

    # ---------- one lane-dense partial row per grid step: [loc, ce, kl, 0...] -
    lane = jax.lax.broadcasted_iota(jnp.int32, (1, 1, _LANE), 2)
    out_ref[...] = jnp.where(lane == 0, loc_sum,
                   jnp.where(lane == 1, ce_sum,
                   jnp.where(lane == 2, kl_sum, 0.0)))


def _round_up(x, m):
    return ((x + m - 1) // m) * m


def _vmem_budget_bytes():
    """Generation-aware VMEM budget (~48 MiB on v7x, ~96 MiB on v5e/v6e)."""
    cap = 64 * 1024 * 1024
    try:
        info = pltpu.get_tpu_info()
        cap = int(getattr(info, "vmem_capacity_bytes", cap))
    except Exception:
        pass
    return max(16 * 1024 * 1024, (cap * 3) // 4)


def distillation_loss(student_outputs, teacher_outputs, targets,
                      alpha=0.5, temperature=2.0, tile_rows=1024):
    student_loc, student_conf = student_outputs
    _, teacher_conf = teacher_outputs          # teacher_loc unused (matches PyTorch forward)
    tgt_loc, tgt_cls = targets

    n, c = student_conf.shape
    l = student_loc.shape[-1]

    conf_itemsize = student_conf.dtype.itemsize
    loc_itemsize = student_loc.dtype.itemsize
    budget = _vmem_budget_bytes()

    def tile_bytes(tn):
        conf_io = 2 * 2 * tn * c * conf_itemsize      # 2 conf inputs, double-buffered
        loc_io = 2 * 2 * tn * l * loc_itemsize        # 2 loc inputs, double-buffered
        cls_io = 2 * tn * _LANE * 4                   # cls block (lanes pad to 128)
        work = 4 * tn * c * 4                         # f32 working tiles (x, exp, t_exp, d)
        return conf_io + loc_io + cls_io + work + 2 * _LANE * 4

    # Largest row tile: <= requested tile_rows, >= 8, capped at N (rounded to 8),
    # halved until it fits the generation-aware VMEM budget.
    tile_n = _round_up(
        min(max(int(tile_rows), _SUBLANE), _round_up(n, _SUBLANE)), _SUBLANE)
    while tile_n > _SUBLANE and tile_bytes(tile_n) > budget:
        tile_n = _round_up(tile_n // 2, _SUBLANE)

    num_tiles = -(-n // tile_n)
    need_mask = (n % tile_n) != 0          # only last tile can be ragged

    kernel = functools.partial(
        _distill_tile_kernel,
        n_rows=n, tile_n=tile_n, inv_temp=1.0 / float(temperature),
        need_mask=need_mask)

    cls = tgt_cls.reshape(-1, 1).astype(jnp.int32)

    vmem_limit = int(min(budget, max(16 * 1024 * 1024, 2 * tile_bytes(tile_n))))

    cost = pl.CostEstimate(
        flops=int(18 * n * c + 6 * n * l),
        transcendentals=int(3 * n * c),
        bytes_accessed=int(2 * n * c * conf_itemsize + 2 * n * l * loc_itemsize
                           + n * 4 + num_tiles * _LANE * 4))

    partials = pl.pallas_call(
        kernel,
        out_shape=jax.ShapeDtypeStruct((num_tiles, 1, _LANE), jnp.float32),
        grid=(num_tiles,),
        in_specs=[
            pl.BlockSpec((tile_n, l), lambda i: (i, 0)),    # student loc
            pl.BlockSpec((tile_n, l), lambda i: (i, 0)),    # target loc
            pl.BlockSpec((tile_n, c), lambda i: (i, 0)),    # student conf
            pl.BlockSpec((tile_n, c), lambda i: (i, 0)),    # teacher conf
            pl.BlockSpec((tile_n, 1), lambda i: (i, 0)),    # target class ids
        ],
        out_specs=pl.BlockSpec((1, 1, _LANE), lambda i: (i, 0, 0)),
        compiler_params=pltpu.CompilerParams(
            dimension_semantics=("parallel",),              # splits across v7x TCs
            vmem_limit_bytes=vmem_limit),
        cost_estimate=cost,
    )(student_loc, tgt_loc, student_conf, teacher_conf, cls)

    # Tiny final reduce + alpha / temperature blend in the wrapper.
    sums = jnp.sum(partials, axis=(0, 1))          # (128,)
    t = float(temperature)
    loc_loss = sums[0] / (n * l)                   # smooth_l1_loss, reduction='mean'
    conf_loss = sums[1] / n                        # cross_entropy, reduction='mean'
    hard_loss = loc_loss + conf_loss
    soft_loss = (sums[2] / n) * (t * t)            # KLDivLoss(batchmean) * T^2
    return (1.0 - float(alpha)) * hard_loss + float(alpha) * soft_loss


def _reference_loss(student_outputs, teacher_outputs, targets,
                    alpha=0.5, temperature=2.0):
    """Pure-JAX reference mirroring the PyTorch semantics (sanity check)."""
    student_loc, student_conf = student_outputs
    _, teacher_conf = teacher_outputs
    tgt_loc, tgt_cls = targets

    diff = student_loc - tgt_loc
    absd = jnp.abs(diff)
    loc_loss = jnp.mean(jnp.where(absd < 1.0, 0.5 * diff * diff, absd - 0.5))

    logp = jax.nn.log_softmax(student_conf, axis=-1)
    ce = -jnp.take_along_axis(logp, tgt_cls.reshape(-1, 1), axis=-1)
    conf_loss = jnp.mean(ce)
    hard = loc_loss + conf_loss

    t = temperature
    s_logp = jax.nn.log_softmax(student_conf / t, axis=-1)
    t_prob = jax.nn.softmax(teacher_conf / t, axis=-1)
    t_logp = jax.nn.log_softmax(teacher_conf / t, axis=-1)
    kl = jnp.sum(t_prob * (t_logp - s_logp)) / student_conf.shape[0]
    soft = kl * t * t
    return (1 - alpha) * hard + alpha * soft


if __name__ == "__main__":
    key = jax.random.PRNGKey(0)

    def make_inputs(k, n, c, l):
        k1, k2, k3, k4, k5, k6 = jax.random.split(k, 6)
        return ((jax.random.normal(k1, (n, l), dtype=jnp.float32),
                 jax.random.normal(k2, (n, c), dtype=jnp.float32)),
                (jax.random.normal(k3, (n, l), dtype=jnp.float32),
                 jax.random.normal(k4, (n, c), dtype=jnp.float32)),
                (jax.random.normal(k5, (n, l), dtype=jnp.float32),
                 jax.random.randint(k6, (n,), 0, c, dtype=jnp.int32)))

    # Case 1: N divides the row tile -> unmasked fast path.
    N, C, L = 8, 16, 4
    k0, k1 = jax.random.split(key)
    s_out, t_out, tgts = make_inputs(k0, N, C, L)
    loss = distillation_loss(s_out, t_out, tgts, alpha=0.5, temperature=2.0)
    loss = jax.block_until_ready(loss)
    ref = _reference_loss(s_out, t_out, tgts, alpha=0.5, temperature=2.0)
    assert jnp.allclose(loss, ref, atol=1e-5, rtol=1e-5), (loss, ref)

    # Case 2: ragged row count -> exercises the in-kernel validity masking.
    N2 = 13
    s_out2, t_out2, tgts2 = make_inputs(k1, N2, C, L)
    loss2 = distillation_loss(s_out2, t_out2, tgts2, alpha=0.3, temperature=3.0)
    loss2 = jax.block_until_ready(loss2)
    ref2 = _reference_loss(s_out2, t_out2, tgts2, alpha=0.3, temperature=3.0)
    assert jnp.allclose(loss2, ref2, atol=1e-5, rtol=1e-5), (loss2, ref2)

    print("KERNEL_OK")
</pallas_src>

<mosaic_0001>
module attributes {stable_mosaic.version = 11 : i64} {
  func.func @_distill_tile_kernel(%arg0: i32, %arg1: memref<8x4xf32, #tpu.memory_space<vmem>>, %arg2: memref<8x4xf32, #tpu.memory_space<vmem>>, %arg3: memref<8x16xf32, #tpu.memory_space<vmem>>, %arg4: memref<8x16xf32, #tpu.memory_space<vmem>>, %arg5: memref<8x1xi32, #tpu.memory_space<vmem>>, %arg6: memref<1x1x128xf32, #tpu.memory_space<vmem>>) attributes {dimension_semantics = [#tpu.dimension_semantics<parallel>], iteration_bounds = array<i64: 1>, scalar_prefetch = 0 : i64, scratch_operands = 0 : i64, tpu.core_type = #tpu.core_type<tc>, window_params = [{transform_indices = @transform_0, window_bounds = array<i64: 8, 4>}, {transform_indices = @transform_1, window_bounds = array<i64: 8, 4>}, {transform_indices = @transform_2, window_bounds = array<i64: 8, 16>}, {transform_indices = @transform_3, window_bounds = array<i64: 8, 16>}, {transform_indices = @transform_4, window_bounds = array<i64: 8, 1>}, {transform_indices = @transform_5, window_bounds = array<i64: 1, 1, 128>}]} {
    %c0 = arith.constant 0 : index
    %c0_0 = arith.constant 0 : index
    %0 = vector.load %arg1[%c0, %c0_0] : memref<8x4xf32, #tpu.memory_space<vmem>>, vector<8x4xf32>
    %c0_1 = arith.constant 0 : index
    %c0_2 = arith.constant 0 : index
    %1 = vector.load %arg2[%c0_1, %c0_2] : memref<8x4xf32, #tpu.memory_space<vmem>>, vector<8x4xf32>
    %2 = arith.subf %0, %1 : vector<8x4xf32>
    %3 = math.absf %2 : vector<8x4xf32>
    %cst = arith.constant 1.000000e+00 : f32
    %4 = vector.broadcast %cst : f32 to vector<8x4xf32>
    %5 = arith.cmpf olt, %3, %4 : vector<8x4xf32>
    %cst_3 = arith.constant 5.000000e-01 : f32
    %6 = vector.broadcast %cst_3 : f32 to vector<8x4xf32>
    %7 = arith.mulf %6, %2 : vector<8x4xf32>
    %8 = arith.mulf %7, %2 : vector<8x4xf32>
    %cst_4 = arith.constant 5.000000e-01 : f32
    %9 = vector.broadcast %cst_4 : f32 to vector<8x4xf32>
    %10 = arith.subf %3, %9 : vector<8x4xf32>
    %11 = arith.select %5, %8, %10 : vector<8x4xi1>, vector<8x4xf32>
    %12 = vector.shape_cast %11 : vector<8x4xf32> to vector<1x8x4xf32>
    %cst_5 = arith.constant dense<0.000000e+00> : vector<1xf32>
    %13 = vector.multi_reduction <add>, %12, %cst_5 [1, 2] : vector<1x8x4xf32> to vector<1xf32>
    %14 = vector.shape_cast %13 : vector<1xf32> to vector<1x1x1xf32>
    %15 = vector.extract %14[0, 0, 0] : f32 from vector<1x1x1xf32>
    %c0_6 = arith.constant 0 : index
    %c0_7 = arith.constant 0 : index
    %16 = vector.load %arg3[%c0_6, %c0_7] : memref<8x16xf32, #tpu.memory_space<vmem>>, vector<8x16xf32>
    %c0_8 = arith.constant 0 : index
    %c0_9 = arith.constant 0 : index
    %17 = vector.load %arg4[%c0_8, %c0_9] : memref<8x16xf32, #tpu.memory_space<vmem>>, vector<8x16xf32>
    %cst_10 = arith.constant dense<0xFF800000> : vector<8xf32>
    %18 = vector.multi_reduction <maximumf>, %16, %cst_10 [1] : vector<8x16xf32> to vector<8xf32>
    %19 = vector.shape_cast %18 : vector<8xf32> to vector<8x1xf32>
    %20 = vector.broadcast %19 : vector<8x1xf32> to vector<8x16xf32>
    %21 = arith.subf %16, %20 : vector<8x16xf32>
    %22 = math.exp %21 : vector<8x16xf32>
    %cst_11 = arith.constant dense<0.000000e+00> : vector<8xf32>
    %23 = vector.multi_reduction <add>, %22, %cst_11 [1] : vector<8x16xf32> to vector<8xf32>
    %24 = vector.shape_cast %23 : vector<8xf32> to vector<8x1xf32>
    %25 = tpu.iota {dimensions = array<i32: 1>} : vector<8x16xi32>
    %c0_12 = arith.constant 0 : index
    %c0_13 = arith.constant 0 : index
    %26 = vector.load %arg5[%c0_12, %c0_13] : memref<8x1xi32, #tpu.memory_space<vmem>>, vector<8x1xi32>
    %27 = vector.broadcast %26 : vector<8x1xi32> to vector<8x16xi32>
    %28 = arith.cmpi eq, %25, %27 : vector<8x16xi32>
    %cst_14 = arith.constant 0.000000e+00 : f32
    %29 = vector.broadcast %cst_14 : f32 to vector<8x16xf32>
    %30 = arith.select %28, %21, %29 : vector<8x16xi1>, vector<8x16xf32>
    %cst_15 = arith.constant dense<0.000000e+00> : vector<8xf32>
    %31 = vector.multi_reduction <add>, %30, %cst_15 [1] : vector<8x16xf32> to vector<8xf32>
    %32 = vector.shape_cast %31 : vector<8xf32> to vector<8x1xf32>
    %33 = math.log %24 : vector<8x1xf32>
    %34 = arith.subf %33, %32 : vector<8x1xf32>
    %cst_16 = arith.constant 5.000000e-01 : f32
    %35 = vector.broadcast %cst_16 : f32 to vector<8x16xf32>
    %36 = arith.mulf %21, %35 : vector<8x16xf32>
    %37 = math.exp %36 : vector<8x16xf32>
    %cst_17 = arith.constant dense<0.000000e+00> : vector<8xf32>
    %38 = vector.multi_reduction <add>, %37, %cst_17 [1] : vector<8x16xf32> to vector<8xf32>
    %39 = vector.shape_cast %38 : vector<8xf32> to vector<8x1xf32>
    %40 = math.log %39 : vector<8x1xf32>
    %cst_18 = arith.constant 5.000000e-01 : f32
    %41 = vector.broadcast %cst_18 : f32 to vector<8x16xf32>
    %42 = arith.mulf %17, %41 : vector<8x16xf32>
    %cst_19 = arith.constant dense<0xFF800000> : vector<8xf32>
    %43 = vector.multi_reduction <maximumf>, %42, %cst_19 [1] : vector<8x16xf32> to vector<8xf32>
    %44 = vector.shape_cast %43 : vector<8xf32> to vector<8x1xf32>
    %45 = vector.broadcast %44 : vector<8x1xf32> to vector<8x16xf32>
    %46 = arith.subf %42, %45 : vector<8x16xf32>
    %47 = math.exp %46 : vector<8x16xf32>
    %cst_20 = arith.constant dense<0.000000e+00> : vector<8xf32>
    %48 = vector.multi_reduction <add>, %47, %cst_20 [1] : vector<8x16xf32> to vector<8xf32>
    %49 = vector.shape_cast %48 : vector<8xf32> to vector<8x1xf32>
    %50 = arith.subf %46, %36 : vector<8x16xf32>
    %51 = vector.broadcast %40 : vector<8x1xf32> to vector<8x16xf32>
    %52 = arith.addf %50, %51 : vector<8x16xf32>
    %53 = arith.mulf %47, %52 : vector<8x16xf32>
    %cst_21 = arith.constant dense<0.000000e+00> : vector<8xf32>
    %54 = vector.multi_reduction <add>, %53, %cst_21 [1] : vector<8x16xf32> to vector<8xf32>
    %55 = vector.shape_cast %54 : vector<8xf32> to vector<8x1xf32>
    %56 = arith.divf %55, %49 : vector<8x1xf32>
    %57 = math.log %49 : vector<8x1xf32>
    %58 = arith.subf %56, %57 : vector<8x1xf32>
    %59 = vector.shape_cast %34 : vector<8x1xf32> to vector<1x8x1xf32>
    %cst_22 = arith.constant dense<0.000000e+00> : vector<1xf32>
    %60 = vector.multi_reduction <add>, %59, %cst_22 [1, 2] : vector<1x8x1xf32> to vector<1xf32>
    %61 = vector.shape_cast %60 : vector<1xf32> to vector<1x1x1xf32>
    %62 = vector.extract %61[0, 0, 0] : f32 from vector<1x1x1xf32>
    %63 = vector.shape_cast %58 : vector<8x1xf32> to vector<1x8x1xf32>
    %cst_23 = arith.constant dense<0.000000e+00> : vector<1xf32>
    %64 = vector.multi_reduction <add>, %63, %cst_23 [1, 2] : vector<1x8x1xf32> to vector<1xf32>
    %65 = vector.shape_cast %64 : vector<1xf32> to vector<1x1x1xf32>
    %66 = vector.extract %65[0, 0, 0] : f32 from vector<1x1x1xf32>
    %67 = tpu.iota {dimensions = array<i32: 2>} : vector<1x1x128xi32>
    %c0_i32 = arith.constant 0 : i32
    %68 = vector.broadcast %c0_i32 : i32 to vector<1x1x128xi32>
    %69 = arith.cmpi eq, %67, %68 : vector<1x1x128xi32>
    %c1_i32 = arith.constant 1 : i32
    %70 = vector.broadcast %c1_i32 : i32 to vector<1x1x128xi32>
    %71 = arith.cmpi eq, %67, %70 : vector<1x1x128xi32>
    %c2_i32 = arith.constant 2 : i32
    %72 = vector.broadcast %c2_i32 : i32 to vector<1x1x128xi32>
    %73 = arith.cmpi eq, %67, %72 : vector<1x1x128xi32>
    %cst_24 = arith.constant 0.000000e+00 : f32
    %74 = vector.broadcast %66 : f32 to vector<1x1x128xf32>
    %75 = vector.broadcast %cst_24 : f32 to vector<1x1x128xf32>
    %76 = arith.select %73, %74, %75 : vector<1x1x128xi1>, vector<1x1x128xf32>
    %77 = vector.broadcast %62 : f32 to vector<1x1x128xf32>
    %78 = arith.select %71, %77, %76 : vector<1x1x128xi1>, vector<1x1x128xf32>
    %79 = vector.broadcast %15 : f32 to vector<1x1x128xf32>
    %80 = arith.select %69, %79, %78 : vector<1x1x128xi1>, vector<1x1x128xf32>
    %c0_25 = arith.constant 0 : index
    %c0_26 = arith.constant 0 : index
    %c0_27 = arith.constant 0 : index
    %81 = vector.load %arg6[%c0_25, %c0_26, %c0_27] : memref<1x1x128xf32, #tpu.memory_space<vmem>>, vector<1x1x128xf32>
    tpu.vector_store %arg6[%c0_25, %c0_26, %c0_27], %80 {strides = array<i32>} : memref<1x1x128xf32, #tpu.memory_space<vmem>>, vector<1x1x128xf32>,
    return
  }
  func.func @transform_0(%arg0: i32) -> (i32, i32) {
    %c0_i32 = arith.constant 0 : i32
    %c0_i32_0 = arith.constant 0 : i32
    return %arg0, %c0_i32 : i32, i32
  }
  func.func @transform_1(%arg0: i32) -> (i32, i32) {
    %c0_i32 = arith.constant 0 : i32
    %c0_i32_0 = arith.constant 0 : i32
    return %arg0, %c0_i32 : i32, i32
  }
  func.func @transform_2(%arg0: i32) -> (i32, i32) {
    %c0_i32 = arith.constant 0 : i32
    %c0_i32_0 = arith.constant 0 : i32
    return %arg0, %c0_i32 : i32, i32
  }
  func.func @transform_3(%arg0: i32) -> (i32, i32) {
    %c0_i32 = arith.constant 0 : i32
    %c0_i32_0 = arith.constant 0 : i32
    return %arg0, %c0_i32 : i32, i32
  }
  func.func @transform_4(%arg0: i32) -> (i32, i32) {
    %c0_i32 = arith.constant 0 : i32
    %c0_i32_0 = arith.constant 0 : i32
    return %arg0, %c0_i32 : i32, i32
  }
  func.func @transform_5(%arg0: i32) -> (i32, i32, i32) {
    %c0_i32 = arith.constant 0 : i32
    %c0_i32_0 = arith.constant 0 : i32
    %c0_i32_1 = arith.constant 0 : i32
    return %arg0, %c0_i32, %c0_i32_0 : i32, i32, i32
  }
}

</mosaic_0001>

<llo_original>
// kernel: tpu_custom_call.1
$region0: #{tpu_custom_call.1}
  #allocation0 [shape = 'u32[]', space=smem, size = 0x4, offset = 0x4, fixed_abs, tag = 'smem constant byte address 0x4 - core index']
  #allocation1 [shape = 'u32[144,128]{1,0:T(1,128)}', space=vmem, size = 0x12000, scoped, tag = 'internal scratch']
  %s0 = inlined_call_operand.vmem [shape: f32[8,4], index: 0, kind: input, shape index: {}]
  %s1 = inlined_call_operand.vmem [shape: f32[8,4], index: 1, kind: input, shape index: {}]
  %s2 = inlined_call_operand.vmem [shape: f32[8,16], index: 2, kind: input, shape index: {}]
  %s3 = inlined_call_operand.vmem [shape: f32[8,16], index: 3, kind: input, shape index: {}]
  %s4 = inlined_call_operand.vmem [shape: s32[8,1], index: 4, kind: input, shape index: {}]
  %s5 = inlined_call_operand.hbm [shape: f32[1,1,128], index: 5, kind: output, shape index: {}]
  %s6 = sld [smem:[#allocation0]]
  $region30: #{tpu_custom_call.1} parent=0
    _
  %s8 = ssub.s32 1, %s6
  %s9 = scalar_select 0, %s8, %s6
  $region1: #{tpu_custom_call.1} parent=0
    #allocation2 [shape = 'u8[512]{0}', space=vmem, size = 0x400, scoped, tag = 'output window, operand 0, single buffered']
    #allocation3 [shape = 's32[1]{0}', space=sflag, size = 0x4, scoped, tag = 'scoped memory for tpu_custom_call.1']
    %10 = vsyncpa [#allocation3], 0
    // Predicated region
    $region2: #{tpu_custom_call.1} parent=1 // pred_check
      _
    $region3: #{tpu_custom_call.1} parent=1 // pred_check_branch
      %12 = sbr.rel (0) target = $region5
    $region4: #{tpu_custom_call.1} parent=1 // pred_region
      _
    $region5: #{tpu_custom_call.1} parent=1 // pred_fallthru
      _
    // Predicated region
    $region6: #{tpu_custom_call.1} parent=1 // pred_check
      _
    $region7: #{tpu_custom_call.1} parent=1 // pred_check_branch
      %14 = sbr.rel (0) target = $region9
    $region8: #{tpu_custom_call.1} parent=1 // pred_region
      _
    $region9: #{tpu_custom_call.1} parent=1 // pred_fallthru
      _
    // Predicated region
    $region10: #{tpu_custom_call.1} parent=1 // pred_check
      _
    $region11: #{tpu_custom_call.1} parent=1 // pred_check_branch
      %16 = sbr.rel (0) target = $region13
    $region12: #{tpu_custom_call.1} parent=1 // pred_region
      _
    $region13: #{tpu_custom_call.1} parent=1 // pred_fallthru
      _
    // Predicated region
    $region14: #{tpu_custom_call.1} parent=1 // pred_check
      _
    $region15: #{tpu_custom_call.1} parent=1 // pred_check_branch
      %18 = sbr.rel (0) target = $region17
    $region16: #{tpu_custom_call.1} parent=1 // pred_region
      _
    $region17: #{tpu_custom_call.1} parent=1 // pred_fallthru
      _
    // Predicated region
    $region18: #{tpu_custom_call.1} parent=1 // pred_check
      _
    $region19: #{tpu_custom_call.1} parent=1 // pred_check_branch
      %20 = sbr.rel (0) target = $region21
    $region20: #{tpu_custom_call.1} parent=1 // pred_region
      _
    $region21: #{tpu_custom_call.1} parent=1 // pred_fallthru
      _
    %v21 = vld [vmem:[%s0] sm:$0xff]
    %v22 = vld [vmem:[%s1] sm:$0xff]
    %v23 = vsub.f32 %v21, %v22
    %v24 = vand.u32 2147483647, %v23
    %vm25 = vcmp.lt.f32.partialorder %v24, 1.0
    %v26 = vmul.f32 %v23, 0.5
    %v27 = vmul.f32 %v26, %v23
    %v28 = vsub.f32 %v24, 0.5
    %v29 = vsel %vm25, %v27, %v28
    %vm30 = vcmask 31744
    %v31 = vsel %vm30, %v29, 0.0
    %32 = vadd.xlane.f32.xlu0 %v31
    %v33 = vpop.xlane.xlu0 %32
    %v34 = vrot.slane %v33, 4
    %v35 = vadd.f32 %v33, %v34
    %v36 = vrot.slane %v35, 2
    %v37 = vadd.f32 %v35, %v36
    %v38 = vrot.slane %v37, 1
    %v39 = vadd.f32 %v37, %v38
    %s40 = vtos %v39
    %v41 = vld [vmem:[%s2] sm:$0xff]
    %v42 = vld [vmem:[%s3] sm:$0xff]
    %vm43 = vcmask 130048
    %v44 = vsel %vm43, %v41, -inf
    %45 = vmax.xlane.f32.xlu0 %v44
    %v46 = vpop.xlane.xlu0 %45
    %v47 = vsub.f32 %v41, %v46
    %v48 = vmul.f32 %v47, 1.442695
    %v49 = vpow.pop %v48
    %v50 = vsel %vm43, %v49, 0.0
    %51 = vadd.xlane.f32.xlu0 %v50
    %v52 = vpop.xlane.xlu0 %51
    %v53 = vlaneseq
    %v54 = vand.u32 %v53, 127
    %v55 = vld [vmem:[%s4] sm:$0xff]
    %56 = vset.pattern.permute.xlu0 0
    %57 = vperm.xlu0 %56, %v55
    %v58 = vpop.permute.xlu0 %57
    %vm59 = vcmp.eq.s32.totalorder %v54, %v58
    %v60 = vsel %vm59, %v47, 0.0
    %v61 = vsel %vm43, %v60, 0.0
    %62 = vadd.xlane.f32.xlu0 %v61
    %v63 = vpop.xlane.xlu0 %62
    %v64 = vlog2.pop %v52
    %v65 = vmul.f32 %v64, 0.6931472
    %v66 = vsub.f32 %v65, %v63
    %v67 = vmul.f32 %v47, 0.5
    %v68 = vmul.f32 %v67, 1.442695
    %v69 = vpow.pop %v68
    %v70 = vsel %vm43, %v69, 0.0
    %71 = vadd.xlane.f32.xlu0 %v70
    %v72 = vpop.xlane.xlu0 %71
    %v73 = vlog2.pop %v72
    %v74 = vmul.f32 %v73, 0.6931472
    %v75 = vmul.f32 %v42, 0.5
    %v76 = vsel %vm43, %v75, -inf
    %77 = vmax.xlane.f32.xlu0 %v76
    %v78 = vpop.xlane.xlu0 %77
    %v79 = vsub.f32 %v75, %v78
    %v80 = vmul.f32 %v79, 1.442695
    %v81 = vpow.pop %v80
    %v82 = vsel %vm43, %v81, 0.0
    %83 = vadd.xlane.f32.xlu0 %v82
    %v84 = vpop.xlane.xlu0 %83
    %v85 = vsub.f32 %v79, %v67
    %v86 = vadd.f32 %v85, %v74
    %v87 = vmul.f32 %v81, %v86
    %v88 = vsel %vm43, %v87, 0.0
    %89 = vadd.xlane.f32.xlu0 %v88
    %v90 = vpop.xlane.xlu0 %89
    %v91 = vrcp.pop %v84
    %v92 = vmul.f32 %v90, %v91
    %v93 = vlog2.pop %v84
    %v94 = vmul.f32 %v93, 0.6931472
    %v95 = vsub.f32 %v92, %v94
    %vm96 = vcmask 7168
    %v97 = vsel %vm96, %v66, 0.0
    %98 = vadd.xlane.f32.xlu0 %v97
    %v99 = vpop.xlane.xlu0 %98
    %v100 = vrot.slane %v99, 4
    %v101 = vadd.f32 %v99, %v100
    %v102 = vrot.slane %v101, 2
    %v103 = vadd.f32 %v101, %v102
    %v104 = vrot.slane %v103, 1
    %v105 = vadd.f32 %v103, %v104
    %s106 = vtos %v105
    %v107 = vsel %vm96, %v95, 0.0
    %108 = vadd.xlane.f32.xlu0 %v107
    %v109 = vpop.xlane.xlu0 %108
    %v110 = vrot.slane %v109, 4
    %v111 = vadd.f32 %v109, %v110
    %v112 = vrot.slane %v111, 2
    %v113 = vadd.f32 %v111, %v112
    %v114 = vrot.slane %v113, 1
    %v115 = vadd.f32 %v113, %v114
    %s116 = vtos %v115
    %vm117 = vcmp.eq.s32.totalorder %v54, 0
    %vm118 = vcmp.eq.s32.totalorder %v54, 1
    %vm119 = vcmp.eq.s32.totalorder %v54, 2
    %v120 = vstv %s116
    %v121 = vsel %vm119, %v120, 0.0
    %v122 = vstv %s106
    %v123 = vsel %vm118, %v122, %v121
    %v124 = vstv %s40
    %v125 = vsel %vm117, %v124, %v123
    %126 = vst [vmem:[#allocation2] sm:$0x1] %v125
    // Predicated region
    $region22: #{tpu_custom_call.1} parent=1 // pred_check
      _
    $region23: #{tpu_custom_call.1} parent=1 // pred_check_branch
      %128 = sbr.rel (0) target = $region25
    $region24: #{tpu_custom_call.1} parent=1 // pred_region
      %s130 = ssub.s32 16, 16
      %131 = vsyncadd [#allocation3], %s130
      %s133 = sshll.u32 [#allocation2], 4
      %s134 = int_to_ptr.vmem [resolvable:$true] %s133
      %136 = dma.vmem_to_hbm [thread:$0]  %s134, 16, %s5, [#allocation3]
    $region25: #{tpu_custom_call.1} parent=1 // pred_fallthru
      _
    // Predicated region
    $region26: #{tpu_custom_call.1} parent=1 // pred_check
      _
    $region27: #{tpu_custom_call.1} parent=1 // pred_check_branch
      %138 = sbr.rel (0) target = $region29
    $region28: #{tpu_custom_call.1} parent=1 // pred_region
      %139 = dma.done [#allocation3], 16
    $region29: #{tpu_custom_call.1} parent=1 // pred_fallthru
      _
    %140 = vsyncpa [#allocation3], 1

</llo_original>
